<compile_context>
chip_gen: v7x
topology: tpu7x:2x2x1
jax: 0.10.0
libtpu: 0.0.40
codegen_flags: <defaults>
</compile_context>

<pallas_src>
import functools

import jax
import jax.numpy as jnp
from jax.experimental import pallas as pl
from jax.experimental.pallas import tpu as pltpu


def _add_kernel(x_ref, y_ref, o_ref):
    # factor == 1: pure add on the VPU.
    o_ref[...] = x_ref[...] + y_ref[...]


def _add_scale_kernel(x_ref, y_ref, o_ref, *, inv_factor):
    # factor == 2: fused add + scale. inv_factor is a Python float literal.
    o_ref[...] = (x_ref[...] + y_ref[...]) * inv_factor


def add_mean_fusion(x, y, factor=1):
    """Pallas implementation of AddMeanFusion.forward: (x + y) / factor."""
    assert factor in (1, 2)
    assert x.shape == y.shape and x.dtype == y.dtype

    orig_shape = x.shape
    size = int(x.size)

    # PyTorch true division returns float; promote integer inputs when dividing.
    if factor != 1 and not jnp.issubdtype(x.dtype, jnp.floating):
        x = x.astype(jnp.float32)
        y = y.astype(jnp.float32)
    out_dtype = x.dtype

    # Empty input: nothing for the kernel to do.
    if size == 0:
        return ((x + y) * (1.0 / factor)).astype(out_dtype).reshape(orig_shape)

    xf = x.reshape(-1)
    yf = y.reshape(-1)

    # Pick a lane width (multiple of 128) that divides the flat size; otherwise
    # pad the tail up to a multiple of 128 (ragged-tail handling).
    lane = None
    for cand in (1024, 512, 256, 128):
        if size % cand == 0:
            lane = cand
            break
    padded = size
    if lane is None:
        lane = 128
        padded = ((size + lane - 1) // lane) * lane
        tail = padded - size
        xf = jnp.pad(xf, (0, tail))
        yf = jnp.pad(yf, (0, tail))

    rows = padded // lane
    x2 = xf.reshape(rows, lane)
    y2 = yf.reshape(rows, lane)

    # Block: at most 512 rows. 512 x 1024 f32 = 2 MiB per block;
    # 3 arrays x 2 double-buffers x 2 MiB = 12 MiB -> fits every generation's
    # default scoped VMEM (v5e 16 MiB, v6e/v7x 32 MiB).
    if rows <= 512:
        block_rows = rows  # block == full array dim, no (8,) alignment needed
    else:
        block_rows = 512   # multiple of 8; edge block handled by Pallas

    grid = (pl.cdiv(rows, block_rows),)

    if factor == 1:
        kernel = _add_kernel
    else:
        kernel = functools.partial(_add_scale_kernel, inv_factor=1.0 / factor)

    itemsize = jnp.dtype(out_dtype).itemsize
    cost = pl.CostEstimate(
        flops=2 * size,
        transcendentals=0,
        bytes_accessed=3 * size * itemsize,
    )

    out2 = pl.pallas_call(
        kernel,
        out_shape=jax.ShapeDtypeStruct((rows, lane), out_dtype),
        grid=grid,
        in_specs=[
            pl.BlockSpec((block_rows, lane), lambda i: (i, 0)),
            pl.BlockSpec((block_rows, lane), lambda i: (i, 0)),
        ],
        out_specs=pl.BlockSpec((block_rows, lane), lambda i: (i, 0)),
        compiler_params=pltpu.CompilerParams(
            dimension_semantics=("parallel",),
        ),
        cost_estimate=cost,
    )(x2, y2)

    outf = out2.reshape(-1)
    if padded != size:
        outf = outf[:size]
    return outf.reshape(orig_shape)


if __name__ == "__main__":
    key = jax.random.PRNGKey(0)
    kx, ky = jax.random.split(key)

    # NCHW input, small shapes: batch=2, channels=4, spatial=16x16.
    x = jax.random.normal(kx, (2, 4, 16, 16), dtype=jnp.float32)
    y = jax.random.normal(ky, (2, 4, 16, 16), dtype=jnp.float32)

    # factor = 2 path (lane-dense divisible path).
    out = add_mean_fusion(x, y, factor=2)
    out = jax.block_until_ready(out)
    ref = (x + y) / 2
    assert out.shape == ref.shape
    assert jnp.allclose(out, ref, atol=1e-6, rtol=1e-6)

    # factor = 1 path on an awkward (non-128-divisible) size -> padded path.
    kx2, ky2 = jax.random.split(ky)
    x2 = jax.random.normal(kx2, (3, 5, 7), dtype=jnp.float32)
    y2 = jax.random.normal(ky2, (3, 5, 7), dtype=jnp.float32)
    out2 = jax.block_until_ready(add_mean_fusion(x2, y2, factor=1))
    ref2 = x2 + y2
    assert out2.shape == ref2.shape
    assert jnp.allclose(out2, ref2, atol=1e-6, rtol=1e-6)

    print("KERNEL_OK")
</pallas_src>

<mosaic_0001>
module attributes {stable_mosaic.version = 11 : i64} {
  func.func @_add_scale_kernel(%arg0: i32, %arg1: memref<2x1024xf32, #tpu.memory_space<vmem>>, %arg2: memref<2x1024xf32, #tpu.memory_space<vmem>>, %arg3: memref<2x1024xf32, #tpu.memory_space<vmem>>) attributes {dimension_semantics = [#tpu.dimension_semantics<parallel>], iteration_bounds = array<i64: 1>, scalar_prefetch = 0 : i64, scratch_operands = 0 : i64, tpu.core_type = #tpu.core_type<tc>, window_params = [{transform_indices = @transform_0, window_bounds = array<i64: 2, 1024>}, {transform_indices = @transform_1, window_bounds = array<i64: 2, 1024>}, {transform_indices = @transform_2, window_bounds = array<i64: 2, 1024>}]} {
    %c0 = arith.constant 0 : index
    %c0_0 = arith.constant 0 : index
    %0 = vector.load %arg1[%c0, %c0_0] : memref<2x1024xf32, #tpu.memory_space<vmem>>, vector<2x1024xf32>
    %c0_1 = arith.constant 0 : index
    %c0_2 = arith.constant 0 : index
    %1 = vector.load %arg2[%c0_1, %c0_2] : memref<2x1024xf32, #tpu.memory_space<vmem>>, vector<2x1024xf32>
    %2 = arith.addf %0, %1 : vector<2x1024xf32>
    %cst = arith.constant 5.000000e-01 : f32
    %3 = vector.broadcast %cst : f32 to vector<2x1024xf32>
    %4 = arith.mulf %2, %3 : vector<2x1024xf32>
    %c0_3 = arith.constant 0 : index
    %c0_4 = arith.constant 0 : index
    %5 = vector.load %arg3[%c0_3, %c0_4] : memref<2x1024xf32, #tpu.memory_space<vmem>>, vector<2x1024xf32>
    tpu.vector_store %arg3[%c0_3, %c0_4], %4 {strides = array<i32>} : memref<2x1024xf32, #tpu.memory_space<vmem>>, vector<2x1024xf32>,
    return
  }
  func.func @transform_0(%arg0: i32) -> (i32, i32) {
    %c0_i32 = arith.constant 0 : i32
    %c0_i32_0 = arith.constant 0 : i32
    return %arg0, %c0_i32 : i32, i32
  }
  func.func @transform_1(%arg0: i32) -> (i32, i32) {
    %c0_i32 = arith.constant 0 : i32
    %c0_i32_0 = arith.constant 0 : i32
    return %arg0, %c0_i32 : i32, i32
  }
  func.func @transform_2(%arg0: i32) -> (i32, i32) {
    %c0_i32 = arith.constant 0 : i32
    %c0_i32_0 = arith.constant 0 : i32
    return %arg0, %c0_i32 : i32, i32
  }
}

</mosaic_0001>

<llo_original>
// kernel: tpu_custom_call.1
$region0: #{tpu_custom_call.1}
  #allocation0 [shape = 'u32[]', space=smem, size = 0x4, offset = 0x4, fixed_abs, tag = 'smem constant byte address 0x4 - core index']
  #allocation1 [shape = 'u32[144,128]{1,0:T(1,128)}', space=vmem, size = 0x12000, scoped, tag = 'internal scratch']
  %s0 = inlined_call_operand.hbm [shape: f32[2,1024], index: 0, kind: input, shape index: {}]
  %s1 = inlined_call_operand.hbm [shape: f32[2,1024], index: 1, kind: input, shape index: {}]
  %s2 = inlined_call_operand.hbm [shape: f32[2,1024], index: 2, kind: output, shape index: {}]
  %s3 = sld [smem:[#allocation0]]
  $region26: #{tpu_custom_call.1} parent=0
    _
  %s5 = ssub.s32 1, %s3
  %s6 = scalar_select 0, %s5, %s3
  $region1: #{tpu_custom_call.1} parent=0
    #allocation2 [shape = 'u8[8192]{0}', space=vmem, size = 0x2000, scoped, tag = 'input window, operand 0, single buffered']
    #allocation3 [shape = 's32[1]{0}', space=sflag, size = 0x4, scoped, tag = 'scoped memory for tpu_custom_call.1']
    #allocation4 [shape = 's32[1]{0}', space=sflag, size = 0x4, scoped, tag = 'scoped memory for tpu_custom_call.1']
    #allocation5 [shape = 'u8[8192]{0}', space=vmem, size = 0x2000, scoped, tag = 'input window, operand 1, single buffered']
    #allocation6 [shape = 's32[1]{0}', space=sflag, size = 0x4, scoped, tag = 'scoped memory for tpu_custom_call.1']
    #allocation7 [shape = 'u8[8192]{0}', space=vmem, size = 0x2000, scoped, tag = 'output window, operand 0, single buffered']
    %7 = vsyncpa [#allocation3], 0
    %8 = vsyncpa [#allocation6], 0
    %9 = vsyncpa [#allocation4], 0
    // Predicated region
    $region2: #{tpu_custom_call.1} parent=1 // pred_check
      _
    $region3: #{tpu_custom_call.1} parent=1 // pred_check_branch
      %11 = sbr.rel (0) target = $region5
    $region4: #{tpu_custom_call.1} parent=1 // pred_region
      %s13 = ssub.s32 256, 256
      %14 = vsyncadd [#allocation3], %s13
      %s16 = sshll.u32 [#allocation2], 4
      %s17 = int_to_ptr.vmem [resolvable:$true] %s16
      %19 = dma.hbm_to_vmem [thread:$0]  %s0, 256, %s17, [#allocation3]
    $region5: #{tpu_custom_call.1} parent=1 // pred_fallthru
      _
    // Predicated region
    $region6: #{tpu_custom_call.1} parent=1 // pred_check
      _
    $region7: #{tpu_custom_call.1} parent=1 // pred_check_branch
      %21 = sbr.rel (0) target = $region9
    $region8: #{tpu_custom_call.1} parent=1 // pred_region
      %s23 = ssub.s32 256, 256
      %24 = vsyncadd [#allocation6], %s23
      %s26 = sshll.u32 [#allocation5], 4
      %s27 = int_to_ptr.vmem [resolvable:$true] %s26
      %29 = dma.hbm_to_vmem [thread:$0]  %s1, 256, %s27, [#allocation6]
    $region9: #{tpu_custom_call.1} parent=1 // pred_fallthru
      _
    // Predicated region
    $region10: #{tpu_custom_call.1} parent=1 // pred_check
      _
    $region11: #{tpu_custom_call.1} parent=1 // pred_check_branch
      %31 = sbr.rel (0) target = $region13
    $region12: #{tpu_custom_call.1} parent=1 // pred_region
      %32 = dma.done [#allocation3], 256
    $region13: #{tpu_custom_call.1} parent=1 // pred_fallthru
      _
    // Predicated region
    $region14: #{tpu_custom_call.1} parent=1 // pred_check
      _
    $region15: #{tpu_custom_call.1} parent=1 // pred_check_branch
      %34 = sbr.rel (0) target = $region17
    $region16: #{tpu_custom_call.1} parent=1 // pred_region
      %35 = dma.done [#allocation6], 256
    $region17: #{tpu_custom_call.1} parent=1 // pred_fallthru
      _
    %v36 = vld [vmem:[#allocation2] sm:$0xff]
    %v37 = vld [vmem:[#allocation2 + $0x8] sm:$0xff]
    %v38 = vld [vmem:[#allocation5] sm:$0xff]
    %v39 = vld [vmem:[#allocation5 + $0x8] sm:$0xff]
    %v40 = vadd.f32 %v36, %v38
    %v41 = vadd.f32 %v37, %v39
    %v42 = vmul.f32 %v40, 0.5
    %v43 = vmul.f32 %v41, 0.5
    %44 = vst [vmem:[#allocation7] sm:$0xff] %v42
    %45 = vst [vmem:[#allocation7 + $0x8] sm:$0xff] %v43
    // Predicated region
    $region18: #{tpu_custom_call.1} parent=1 // pred_check
      _
    $region19: #{tpu_custom_call.1} parent=1 // pred_check_branch
      %47 = sbr.rel (0) target = $region21
    $region20: #{tpu_custom_call.1} parent=1 // pred_region
      %s49 = ssub.s32 256, 256
      %50 = vsyncadd [#allocation4], %s49
      %s52 = sshll.u32 [#allocation7], 4
      %s53 = int_to_ptr.vmem [resolvable:$true] %s52
      %55 = dma.vmem_to_hbm [thread:$0]  %s53, 256, %s2, [#allocation4]
    $region21: #{tpu_custom_call.1} parent=1 // pred_fallthru
      _
    // Predicated region
    $region22: #{tpu_custom_call.1} parent=1 // pred_check
      _
    $region23: #{tpu_custom_call.1} parent=1 // pred_check_branch
      %57 = sbr.rel (0) target = $region25
    $region24: #{tpu_custom_call.1} parent=1 // pred_region
      %58 = dma.done [#allocation4], 256
    $region25: #{tpu_custom_call.1} parent=1 // pred_fallthru
      _
    %59 = vsyncpa [#allocation3], 1
    %60 = vsyncpa [#allocation6], 1
    %61 = vsyncpa [#allocation4], 1

</llo_original>
